<compile_context>
chip_gen: v5e
topology: v5e:2x2
jax: 0.10.0
libtpu: 0.0.40
codegen_flags: <defaults>
</compile_context>

<pallas_src>
import jax
import jax.numpy as jnp
from jax import lax
from jax.experimental import pallas as pl
from jax.experimental.pallas import tpu as pltpu

EPS = 1e-5
LANE = 128


def _round_up(x, m):
    return (x + m - 1) // m * m


# ---------------------------------------------------------------------------
# Pallas kernels
# ---------------------------------------------------------------------------
def _conv_stats_kernel(x_ref, w_ref, raw_ref, stats_ref):
    """One M-tile of conv-as-matmul (bf16 operands, f32 accumulate) + BN partial stats."""
    y = jnp.dot(x_ref[...], w_ref[...], preferred_element_type=jnp.float32)
    raw_ref[...] = y
    s = jnp.sum(y, axis=0, keepdims=True)          # per-channel sum   (1, C)
    ss = jnp.sum(y * y, axis=0, keepdims=True)     # per-channel sumsq (1, C)
    pad = jnp.zeros((6, y.shape[1]), jnp.float32)
    stats_ref[...] = jnp.concatenate([s, ss, pad], axis=0)   # (8, C) tile-aligned


def _bn_relu_kernel(raw_ref, aff_ref, out_ref):
    """y = relu(raw*scale + shift), cast to the bf16 matmul-input dtype."""
    aff = aff_ref[...]
    y = raw_ref[...] * aff[0:1, :] + aff[1:2, :]
    out_ref[...] = jnp.maximum(y, 0.0).astype(out_ref.dtype)


def _bn_add_relu_kernel(rawm_ref, rawsc_ref, aff_ref, out_ref):
    """Fused bn2 + shortcut-bn + residual add + final relu."""
    aff = aff_ref[...]
    main = rawm_ref[...] * aff[0:1, :] + aff[1:2, :]
    sc = rawsc_ref[...] * aff[2:3, :] + aff[3:4, :]
    out_ref[...] = jnp.maximum(main + sc, 0.0)


_PARALLEL = pltpu.CompilerParams(dimension_semantics=("parallel",))


# ---------------------------------------------------------------------------
# pallas_call wrappers (M-tiled, pipelined, "parallel" grid)
# ---------------------------------------------------------------------------
def conv_with_stats(xcol, w, *, tm):
    Mp, K = xcol.shape
    Cw = w.shape[1]
    T = Mp // tm
    raw, stats = pl.pallas_call(
        _conv_stats_kernel,
        out_shape=(jax.ShapeDtypeStruct((Mp, Cw), jnp.float32),
                   jax.ShapeDtypeStruct((T * 8, Cw), jnp.float32)),
        grid=(T,),
        in_specs=[pl.BlockSpec((tm, K), lambda i: (i, 0)),
                  pl.BlockSpec((K, Cw), lambda i: (0, 0))],
        out_specs=(pl.BlockSpec((tm, Cw), lambda i: (i, 0)),
                   pl.BlockSpec((8, Cw), lambda i: (i, 0))),
        compiler_params=_PARALLEL,
    )(xcol, w)
    stats = stats.reshape(T, 8, Cw)
    return raw, jnp.sum(stats[:, 0, :], axis=0), jnp.sum(stats[:, 1, :], axis=0)


def bn_relu(raw, aff, *, tm, out_dtype):
    """Normalize+relu the first 128 channels of `raw` ((Mp, >=128) f32)."""
    Mp = raw.shape[0]
    T = Mp // tm
    return pl.pallas_call(
        _bn_relu_kernel,
        out_shape=jax.ShapeDtypeStruct((Mp, LANE), out_dtype),
        grid=(T,),
        in_specs=[pl.BlockSpec((tm, LANE), lambda i: (i, 0)),
                  pl.BlockSpec((2, LANE), lambda i: (0, 0))],
        out_specs=pl.BlockSpec((tm, LANE), lambda i: (i, 0)),
        compiler_params=_PARALLEL,
    )(raw, aff)


def bn_add_relu(raw_main, raw_stage1, aff, *, tm):
    """relu(bn2(raw_main) + bn_sc(raw_stage1[:, 128:256])) — one fused kernel."""
    Mp = raw_main.shape[0]
    T = Mp // tm
    return pl.pallas_call(
        _bn_add_relu_kernel,
        out_shape=jax.ShapeDtypeStruct((Mp, LANE), jnp.float32),
        grid=(T,),
        in_specs=[pl.BlockSpec((tm, LANE), lambda i: (i, 0)),
                  pl.BlockSpec((tm, LANE), lambda i: (i, 1)),   # shortcut half of stage-1 raw
                  pl.BlockSpec((4, LANE), lambda i: (0, 0))],
        out_specs=pl.BlockSpec((tm, LANE), lambda i: (i, 0)),
        compiler_params=_PARALLEL,
    )(raw_main, raw_stage1, aff)


# ---------------------------------------------------------------------------
# JAX glue: channels-last patch extraction, padding, weight packing
# ---------------------------------------------------------------------------
def _im2col_nhwc(x_nhwc, kh, kw, stride, pad):
    """(N, H, W, C) -> (N*OH*OW, kh*kw*C), K ordered (patch, C) — channels stay minor."""
    N, H, W, C = x_nhwc.shape
    xp = jnp.pad(x_nhwc, ((0, 0), (pad, pad), (pad, pad), (0, 0)))
    OH = (H + 2 * pad - kh) // stride + 1
    OW = (W + 2 * pad - kw) // stride + 1
    cols = []
    for i in range(kh):
        for j in range(kw):
            cols.append(xp[:, i:i + stride * OH:stride, j:j + stride * OW:stride, :])
    col = jnp.stack(cols, axis=3).reshape(N * OH * OW, kh * kw * C)
    return col, OH, OW


def _pad_rows(a, rows):
    return jnp.pad(a, ((0, rows - a.shape[0]), (0, 0)))


def _pad_cols(a, cols):
    return jnp.pad(a, ((0, 0), (0, cols - a.shape[1])))


def _pad_vec(v, n):
    return jnp.pad(v, (0, n - v.shape[0]))


def _affine(mean, var, gamma, beta):
    scale = gamma * lax.rsqrt(var + EPS)
    return scale, beta - mean * scale


# ---------------------------------------------------------------------------
# The block
# ---------------------------------------------------------------------------
def resnet18_basic_block(x, p):
    """x: (N, C_in, H, W) float32 NCHW (PyTorch layout). Returns (N, C_out, H', W')."""
    N, Cin, H, W = x.shape
    Cout, _, kh, kw = p["w1"].shape
    s1, s2 = p["stride"]
    pad = p["pad"]
    assert kh == 3 and kw == 3 and pad == 1 and s1 == 2, \
        "fused shortcut assumes conv1 3x3/s2/p1 + 1x1/s2/p0 shortcut"
    assert Cout <= LANE

    # ---- stage A: conv1 + 1x1 shortcut fused in one 256-lane matmul --------
    x_nhwc = jnp.transpose(x, (0, 2, 3, 1))            # channels-last from here on
    xcol1, OH1, OW1 = _im2col_nhwc(x_nhwc, kh, kw, s1, pad)
    M = N * OH1 * OW1
    K1 = kh * kw * Cin
    K1p = _round_up(K1, 16)

    tm = min(512, _round_up(M, 16))
    Mp = _round_up(M, tm)

    xcol1 = _pad_cols(_pad_rows(xcol1, Mp), K1p).astype(jnp.bfloat16)

    # combined weight: cols [0,128) = conv1 (3x3), cols [128,256) = shortcut 1x1
    # applied to the centre tap of each 3x3 patch (same stride-2 sample points).
    # Conv biases are skipped: they cancel exactly under batch-stat BatchNorm.
    w1_col = jnp.transpose(p["w1"], (2, 3, 1, 0)).reshape(K1, Cout)
    w3_col = p["w3"][:, :, 0, 0].T                     # (Cin, Cout)
    ctr = (kh // 2) * kw + (kw // 2)
    wA = jnp.zeros((K1p, 2 * LANE), jnp.float32)
    wA = wA.at[:K1, :Cout].set(w1_col)
    wA = wA.at[ctr * Cin:(ctr + 1) * Cin, LANE:LANE + Cout].set(w3_col)
    wA = wA.astype(jnp.bfloat16)

    rawA, sumA, sqA = conv_with_stats(xcol1, wA, tm=tm)
    meanA = sumA / M
    varA = jnp.maximum(sqA / M - meanA * meanA, 0.0)

    g1 = _pad_vec(p["g1"], LANE); bt1 = _pad_vec(p["bt1"], LANE)
    g3 = _pad_vec(p["g3"], LANE); bt3 = _pad_vec(p["bt3"], LANE)
    sc1, sh1 = _affine(meanA[:LANE], varA[:LANE], g1, bt1)
    sc3, sh3 = _affine(meanA[LANE:], varA[LANE:], g3, bt3)

    # ---- bn1 + relu: emits bf16 channels-last, ready as conv2 matmul input --
    y1 = bn_relu(rawA, jnp.stack([sc1, sh1]), tm=tm, out_dtype=jnp.bfloat16)

    # ---- stage C: conv2 ------------------------------------------------------
    # TODO(synk): im2col still duplicates activation bytes 9x in HBM; a halo'd
    # in-kernel patch gather (manual DMA) would cut conv2 input traffic further.
    y1_nhwc = y1[:M].reshape(N, OH1, OW1, LANE)
    xcol2, OH2, OW2 = _im2col_nhwc(y1_nhwc, kh, kw, s2, pad)
    M2 = N * OH2 * OW2
    assert M2 == M, "residual add requires matching spatial dims"
    xcol2 = _pad_rows(xcol2, Mp)

    w2_col = jnp.transpose(p["w2"], (2, 3, 1, 0))      # (kh, kw, Cin=Cout, Cout)
    w2p = jnp.zeros((kh, kw, LANE, LANE), jnp.float32)
    w2p = w2p.at[:, :, :Cout, :Cout].set(w2_col)
    w2p = w2p.reshape(kh * kw * LANE, LANE).astype(jnp.bfloat16)

    rawB, sumB, sqB = conv_with_stats(xcol2, w2p, tm=tm)
    meanB = sumB / M
    varB = jnp.maximum(sqB / M - meanB * meanB, 0.0)
    g2 = _pad_vec(p["g2"], LANE); bt2 = _pad_vec(p["bt2"], LANE)
    sc2, sh2 = _affine(meanB, varB, g2, bt2)

    # ---- bn2 + shortcut-bn + residual add + final relu (one fused kernel) ---
    out = bn_add_relu(rawB, rawA, jnp.stack([sc2, sh2, sc3, sh3]), tm=tm)

    out = out[:M, :Cout].reshape(N, OH2, OW2, Cout)
    return jnp.transpose(out, (0, 3, 1, 2))            # back to NCHW like PyTorch


# ---------------------------------------------------------------------------
# Pure-JAX f32 reference (for correctness check)
# ---------------------------------------------------------------------------
def ref_block(x, p):
    def conv(z, w, b, s, pad):
        return lax.conv_general_dilated(
            z, w, (s, s), [(pad, pad), (pad, pad)],
            dimension_numbers=("NCHW", "OIHW", "NCHW")) + b[None, :, None, None]

    def bn(y, g, bt):
        mean = jnp.mean(y, axis=(0, 2, 3), keepdims=True)
        var = jnp.mean((y - mean) ** 2, axis=(0, 2, 3), keepdims=True)
        return (y - mean) / jnp.sqrt(var + EPS) * g[None, :, None, None] + bt[None, :, None, None]

    out = jax.nn.relu(bn(conv(x, p["w1"], p["b1"], p["stride"][0], p["pad"]), p["g1"], p["bt1"]))
    out = bn(conv(out, p["w2"], p["b2"], p["stride"][1], p["pad"]), p["g2"], p["bt2"])
    sc = bn(conv(x, p["w3"], p["b3"], 2, 0), p["g3"], p["bt3"])
    return jax.nn.relu(out + sc)


# ---------------------------------------------------------------------------
if __name__ == "__main__":
    # Module config: ResNet18BasicBlock(in_channel=4, outs=8, kernerl_size=[3,3],
    #                                   stride=[2,1], padding=[1,1])
    Cin, Cout, K = 4, 8, 3
    N, H, W = 2, 16, 16

    key = jax.random.PRNGKey(0)
    ks = jax.random.split(key, 13)
    p = {
        "w1": jax.random.normal(ks[0], (Cout, Cin, K, K), jnp.float32) * 0.1,
        "b1": jax.random.normal(ks[1], (Cout,), jnp.float32) * 0.1,
        "g1": 1.0 + 0.1 * jax.random.normal(ks[2], (Cout,), jnp.float32),
        "bt1": 0.1 * jax.random.normal(ks[3], (Cout,), jnp.float32),
        "w2": jax.random.normal(ks[4], (Cout, Cout, K, K), jnp.float32) * 0.1,
        "b2": jax.random.normal(ks[5], (Cout,), jnp.float32) * 0.1,
        "g2": 1.0 + 0.1 * jax.random.normal(ks[6], (Cout,), jnp.float32),
        "bt2": 0.1 * jax.random.normal(ks[7], (Cout,), jnp.float32),
        "w3": jax.random.normal(ks[8], (Cout, Cin, 1, 1), jnp.float32) * 0.1,
        "b3": jax.random.normal(ks[9], (Cout,), jnp.float32) * 0.1,
        "g3": 1.0 + 0.1 * jax.random.normal(ks[10], (Cout,), jnp.float32),
        "bt3": 0.1 * jax.random.normal(ks[11], (Cout,), jnp.float32),
        "stride": (2, 1),
        "pad": 1,
    }

    x = jax.random.normal(ks[12], (N, Cin, H, W), jnp.float32)

    out = jax.block_until_ready(resnet18_basic_block(x, p))
    ref = jax.block_until_ready(ref_block(x, p))

    assert out.shape == ref.shape == (N, Cout, H // 2, W // 2), (out.shape, ref.shape)
    # bf16 matmul operands (f32 accumulation) -> loosened tolerance vs the f32 reference.
    max_diff = float(jnp.max(jnp.abs(out - ref)))
    assert jnp.allclose(out, ref, atol=5e-2, rtol=5e-2), max_diff

    print("KERNEL_OK")
</pallas_src>

<mosaic_0001>
module attributes {stable_mosaic.version = 11 : i64} {
  func.func @_conv_stats_kernel(%arg0: i32, %arg1: memref<128x48xbf16, #tpu.memory_space<vmem>>, %arg2: memref<48x256xbf16, #tpu.memory_space<vmem>>, %arg3: memref<128x256xf32, #tpu.memory_space<vmem>>, %arg4: memref<8x256xf32, #tpu.memory_space<vmem>>) attributes {dimension_semantics = [#tpu.dimension_semantics<parallel>], iteration_bounds = array<i64: 1>, scalar_prefetch = 0 : i64, scratch_operands = 0 : i64, tpu.core_type = #tpu.core_type<tc>, window_params = [{transform_indices = @transform_0, window_bounds = array<i64: 128, 48>}, {pipeline_mode = #tpu.pipeline_mode<synchronous>, transform_indices = @transform_1, window_bounds = array<i64: 48, 256>}, {transform_indices = @transform_2, window_bounds = array<i64: 128, 256>}, {transform_indices = @transform_3, window_bounds = array<i64: 8, 256>}]} {
    %c0 = arith.constant 0 : index
    %c0_0 = arith.constant 0 : index
    %0 = vector.load %arg1[%c0, %c0_0] : memref<128x48xbf16, #tpu.memory_space<vmem>>, vector<128x48xbf16>
    %c0_1 = arith.constant 0 : index
    %c0_2 = arith.constant 0 : index
    %1 = vector.load %arg2[%c0_1, %c0_2] : memref<48x256xbf16, #tpu.memory_space<vmem>>, vector<48x256xbf16>
    %cst = arith.constant dense<0.000000e+00> : vector<128x256xf32>
    %2 = tpu.matmul %0, %1, %cst {dimension_numbers = #tpu.dot_dimension_numbers<[1], [0], [0], [1], [0, 0, 1, 1], [], []>} : vector<128x48xbf16>, vector<48x256xbf16>, vector<128x256xf32> -> vector<128x256xf32>
    %c0_3 = arith.constant 0 : index
    %c0_4 = arith.constant 0 : index
    %3 = vector.load %arg3[%c0_3, %c0_4] : memref<128x256xf32, #tpu.memory_space<vmem>>, vector<128x256xf32>
    tpu.vector_store %arg3[%c0_3, %c0_4], %2 {strides = array<i32>} : memref<128x256xf32, #tpu.memory_space<vmem>>, vector<128x256xf32>,
    %cst_5 = arith.constant dense<0.000000e+00> : vector<256xf32>
    %4 = vector.multi_reduction <add>, %2, %cst_5 [0] : vector<128x256xf32> to vector<256xf32>
    %5 = vector.shape_cast %4 : vector<256xf32> to vector<1x256xf32>
    %6 = arith.mulf %2, %2 : vector<128x256xf32>
    %cst_6 = arith.constant dense<0.000000e+00> : vector<256xf32>
    %7 = vector.multi_reduction <add>, %6, %cst_6 [0] : vector<128x256xf32> to vector<256xf32>
    %8 = vector.shape_cast %7 : vector<256xf32> to vector<1x256xf32>
    %cst_7 = arith.constant 0.000000e+00 : f32
    %9 = vector.broadcast %cst_7 : f32 to vector<6x256xf32>
    %10 = tpu.concatenate %5, %8, %9 in 0 : vector<1x256xf32>, vector<1x256xf32>, vector<6x256xf32> -> vector<8x256xf32>
    %c0_8 = arith.constant 0 : index
    %c0_9 = arith.constant 0 : index
    %11 = vector.load %arg4[%c0_8, %c0_9] : memref<8x256xf32, #tpu.memory_space<vmem>>, vector<8x256xf32>
    tpu.vector_store %arg4[%c0_8, %c0_9], %10 {strides = array<i32>} : memref<8x256xf32, #tpu.memory_space<vmem>>, vector<8x256xf32>,
    return
  }
  func.func @transform_0(%arg0: i32) -> (i32, i32) {
    %c0_i32 = arith.constant 0 : i32
    %c0_i32_0 = arith.constant 0 : i32
    return %arg0, %c0_i32 : i32, i32
  }
  func.func @transform_1(%arg0: i32) -> (i32, i32) {
    %c0_i32 = arith.constant 0 : i32
    %c0_i32_0 = arith.constant 0 : i32
    %c0_i32_1 = arith.constant 0 : i32
    return %c0_i32, %c0_i32_0 : i32, i32
  }
  func.func @transform_2(%arg0: i32) -> (i32, i32) {
    %c0_i32 = arith.constant 0 : i32
    %c0_i32_0 = arith.constant 0 : i32
    return %arg0, %c0_i32 : i32, i32
  }
  func.func @transform_3(%arg0: i32) -> (i32, i32) {
    %c0_i32 = arith.constant 0 : i32
    %c0_i32_0 = arith.constant 0 : i32
    return %arg0, %c0_i32 : i32, i32
  }
}

</mosaic_0001>

<llo_original>
// kernel: tpu_custom_call.1
$region0: #{tpu_custom_call.1}
  #allocation0 [shape = 'u32[]', space=smem, size = 0x4, offset = 0x4, fixed_abs, tag = 'smem constant byte address 0x4 - core index']
  #allocation1 [shape = 'u32[72,128]{1,0:T(1,128)}', space=vmem, size = 0x9000, scoped, tag = 'internal scratch']
  %s0 = inlined_call_operand.vmem [shape: bf16[128,48], index: 0, kind: input, shape index: {}]
  %s1 = inlined_call_operand.vmem [shape: bf16[48,256], index: 1, kind: input, shape index: {}]
  %s2 = inlined_call_operand.hbm [shape: f32[128,256], index: 2, kind: output, shape index: {0}]
  %s3 = inlined_call_operand.hbm [shape: f32[8,256], index: 3, kind: output, shape index: {1}]
  %4 = xla_tuple %s2, %s3
  %s5 = sld [smem:[#allocation0]]
  $region26: #{tpu_custom_call.1} parent=0
    _
  %s7 = ssub.s32 1, %s5
  %s8 = scalar_select 0, %s7, %s5
  $region1: #{tpu_custom_call.1} parent=0
    #allocation2 [shape = 'u8[131072]{0}', space=vmem, size = 0x20000, scoped, tag = 'output window, operand 0, single buffered']
    #allocation3 [shape = 's32[1]{0}', space=sflag, size = 0x4, scoped, tag = 'scoped memory for tpu_custom_call.1']
    #allocation4 [shape = 'u8[8192]{0}', space=vmem, size = 0x2000, scoped, tag = 'output window, operand 1, single buffered']
    #allocation5 [shape = 's32[1]{0}', space=sflag, size = 0x4, scoped, tag = 'scoped memory for tpu_custom_call.1']
    %9 = vsyncpa [#allocation3], 0
    %10 = vsyncpa [#allocation5], 0
    // Predicated region
    $region2: #{tpu_custom_call.1} parent=1 // pred_check
      _
    $region3: #{tpu_custom_call.1} parent=1 // pred_check_branch
      %12 = sbr.rel (0) target = $region5
    $region4: #{tpu_custom_call.1} parent=1 // pred_region
      _
    $region5: #{tpu_custom_call.1} parent=1 // pred_fallthru
      _
    // Predicated region
    $region6: #{tpu_custom_call.1} parent=1 // pred_check
      _
    $region7: #{tpu_custom_call.1} parent=1 // pred_check_branch
      %14 = sbr.rel (0) target = $region9
    $region8: #{tpu_custom_call.1} parent=1 // pred_region
      _
    $region9: #{tpu_custom_call.1} parent=1 // pred_fallthru
      _
    %v16 = vld [vmem:[%s0] sm:$0xf]
    %v17 = vld [vmem:[%s0 + $0x4] sm:$0xf]
    %v18 = vld [vmem:[%s0 + $0x8] sm:$0xf]
    %v19 = vld [vmem:[%s0 + $0xc] sm:$0xf]
    %v20 = vld [vmem:[%s0 + $0x10] sm:$0xf]
    %v21 = vld [vmem:[%s0 + $0x14] sm:$0xf]
    %v22 = vld [vmem:[%s0 + $0x18] sm:$0xf]
    %v23 = vld [vmem:[%s0 + $0x1c] sm:$0xf]
    %v24 = vld [vmem:[%s0 + $0x20] sm:$0xf]
    %v25 = vld [vmem:[%s0 + $0x24] sm:$0xf]
    %v26 = vld [vmem:[%s0 + $0x28] sm:$0xf]
    %v27 = vld [vmem:[%s0 + $0x2c] sm:$0xf]
    %v28 = vld [vmem:[%s0 + $0x30] sm:$0xf]
    %v29 = vld [vmem:[%s0 + $0x34] sm:$0xf]
    %v30 = vld [vmem:[%s0 + $0x38] sm:$0xf]
    %v31 = vld [vmem:[%s0 + $0x3c] sm:$0xf]
    %v32 = vld [vmem:[%s1] sm:$0xff]
    %v33 = vld [vmem:[%s1 + $0x8] sm:$0xff]
    %v34 = vld [vmem:[%s1 + $0x10] sm:$0xff]
    %v35 = vld [vmem:[%s1 + $0x18] sm:$0xff]
    %v36 = vld [vmem:[%s1 + $0x20] sm:$0xff]
    %v37 = vld [vmem:[%s1 + $0x28] sm:$0xff]
    %v54 = vunpack.c.l.b16 %v16
    %v55 = vunpack.c.l.b16 %v17
    %v56 = vunpack.c.l.b16 %v18
    %v57 = vunpack.c.l.b16 %v19
    %v58 = vunpack.c.l.b16 %v20
    %v59 = vunpack.c.l.b16 %v21
    %v60 = vunpack.c.l.b16 %v22
    %v61 = vunpack.c.l.b16 %v23
    %v62 = vunpack.c.l.b16 %v24
    %v63 = vunpack.c.l.b16 %v25
    %v64 = vunpack.c.l.b16 %v26
    %v65 = vunpack.c.l.b16 %v27
    %v66 = vunpack.c.l.b16 %v28
    %v67 = vunpack.c.l.b16 %v29
    %v68 = vunpack.c.l.b16 %v30
    %v69 = vunpack.c.l.b16 %v31
    %v70 = vpack.c.b16 %v55, %v54
    %v71 = vpack.c.b16 %v57, %v56
    %v72 = vpack.c.b16 %v59, %v58
    %v73 = vpack.c.b16 %v61, %v60
    %v74 = vpack.c.b16 %v63, %v62
    %v75 = vpack.c.b16 %v65, %v64
    %v76 = vpack.c.b16 %v67, %v66
    %v77 = vpack.c.b16 %v69, %v68
    %v84 = vunpack.c.l.b16 %v32
    %v85 = vunpack.c.h.b16 %v32
    %v86 = vunpack.c.l.b16 %v33
    %v87 = vunpack.c.h.b16 %v33
    %v88 = vunpack.c.l.b16 %v34
    %v89 = vunpack.c.h.b16 %v34
    %v90 = vunpack.c.l.b16 %v35
    %v91 = vunpack.c.h.b16 %v35
    %v92 = vunpack.c.l.b16 %v36
    %v93 = vunpack.c.h.b16 %v36
    %v94 = vunpack.c.l.b16 %v37
    %v95 = vunpack.c.h.b16 %v37
    %v96 = vpack.c.b16 %v86, %v84
    %v97 = vpack.c.b16 %v87, %v85
    %v98 = vpack.c.b16 %v90, %v88
    %v99 = vpack.c.b16 %v91, %v89
    %v100 = vpack.c.b16 %v94, %v92
    %v101 = vpack.c.b16 %v95, %v93
    %vm108 = vcmask 392192
    %v110 = vsel %vm108, %v70, 0
    %v113 = vsel %vm108, %v71, 0
    %v116 = vsel %vm108, %v72, 0
    %v119 = vsel %vm108, %v73, 0
    %v122 = vsel %vm108, %v74, 0
    %v125 = vsel %vm108, %v75, 0
    %v128 = vsel %vm108, %v76, 0
    %v131 = vsel %vm108, %v77, 0
    %133 = vmatpush.bf16.msra.mxu0 0
    %134 = vmatpush.bf16.msra.mxu0 0
    %135 = vmatpush.bf16.msra.mxu0 0
    %136 = vmatpush.bf16.msra.mxu0 0
    %137 = vmatpush.bf16.msra.mxu0 0
    %138 = vmatpush.bf16.msra.mxu0 %v100
    %139 = vmatpush.bf16.msra.mxu0 %v98
    %140 = vmatpush.bf16.msra.mxu0 %v96
    %141 = vmatmul.bf16.gmra.mxu0 %v110
    %v142 = vpop.f32.mrf.mxu0
    %v143 = vadd.f32 0.0, %v142
    %v144 = vpop.f32.mrf.mxu0
    %v145 = vadd.f32 0.0, %v144
    %146 = vmatmul.bf16.gmra.mxu0 %v113
    %v147 = vpop.f32.mrf.mxu0
    %v148 = vadd.f32 0.0, %v147
    %v149 = vpop.f32.mrf.mxu0
    %v150 = vadd.f32 0.0, %v149
    %151 = vmatmul.bf16.gmra.mxu0 %v116
    %v152 = vpop.f32.mrf.mxu0
    %v153 = vadd.f32 0.0, %v152
    %v154 = vpop.f32.mrf.mxu0
    %v155 = vadd.f32 0.0, %v154
    %156 = vmatmul.bf16.gmra.mxu0 %v119
    %v157 = vpop.f32.mrf.mxu0
    %v158 = vadd.f32 0.0, %v157
    %v159 = vpop.f32.mrf.mxu0
    %v160 = vadd.f32 0.0, %v159
    %161 = vmatmul.bf16.gmra.mxu0 %v122
    %v162 = vpop.f32.mrf.mxu0
    %v163 = vadd.f32 0.0, %v162
    %v164 = vpop.f32.mrf.mxu0
    %v165 = vadd.f32 0.0, %v164
    %166 = vmatmul.bf16.gmra.mxu0 %v125
    %v167 = vpop.f32.mrf.mxu0
    %v168 = vadd.f32 0.0, %v167
    %v169 = vpop.f32.mrf.mxu0
    %v170 = vadd.f32 0.0, %v169
    %171 = vmatmul.bf16.gmra.mxu0 %v128
    %v172 = vpop.f32.mrf.mxu0
    %v173 = vadd.f32 0.0, %v172
    %v174 = vpop.f32.mrf.mxu0
    %v175 = vadd.f32 0.0, %v174
    %176 = vmatmul.bf16.gmra.mxu0 %v131
    %v177 = vpop.f32.mrf.mxu0
    %v178 = vadd.f32 0.0, %v177
    %v179 = vpop.f32.mrf.mxu0
    %v180 = vadd.f32 0.0, %v179
    %181 = vdwg.mxu0
    %182 = vmatpush.bf16.msra.mxu0 0
    %183 = vmatpush.bf16.msra.mxu0 0
    %184 = vmatpush.bf16.msra.mxu0 0
    %185 = vmatpush.bf16.msra.mxu0 0
    %186 = vmatpush.bf16.msra.mxu0 0
    %187 = vmatpush.bf16.msra.mxu0 %v101
    %188 = vmatpush.bf16.msra.mxu0 %v99
    %189 = vmatpush.bf16.msra.mxu0 %v97
    %190 = vmatmul.bf16.gmra.mxu0 %v110
    %v191 = vpop.f32.mrf.mxu0
    %v192 = vadd.f32 0.0, %v191
    %v193 = vpop.f32.mrf.mxu0
    %v194 = vadd.f32 0.0, %v193
    %195 = vmatmul.bf16.gmra.mxu0 %v113
    %v196 = vpop.f32.mrf.mxu0
    %v197 = vadd.f32 0.0, %v196
    %v198 = vpop.f32.mrf.mxu0
    %v199 = vadd.f32 0.0, %v198
    %200 = vmatmul.bf16.gmra.mxu0 %v116
    %v201 = vpop.f32.mrf.mxu0
    %v202 = vadd.f32 0.0, %v201
    %v203 = vpop.f32.mrf.mxu0
    %v204 = vadd.f32 0.0, %v203
    %205 = vmatmul.bf16.gmra.mxu0 %v119
    %v206 = vpop.f32.mrf.mxu0
    %v207 = vadd.f32 0.0, %v206
    %v208 = vpop.f32.mrf.mxu0
    %v209 = vadd.f32 0.0, %v208
    %210 = vmatmul.bf16.gmra.mxu0 %v122
    %v211 = vpop.f32.mrf.mxu0
    %v212 = vadd.f32 0.0, %v211
    %v213 = vpop.f32.mrf.mxu0
    %v214 = vadd.f32 0.0, %v213
    %215 = vmatmul.bf16.gmra.mxu0 %v125
    %v216 = vpop.f32.mrf.mxu0
    %v217 = vadd.f32 0.0, %v216
    %v218 = vpop.f32.mrf.mxu0
    %v219 = vadd.f32 0.0, %v218
    %220 = vmatmul.bf16.gmra.mxu0 %v128
    %v221 = vpop.f32.mrf.mxu0
    %v222 = vadd.f32 0.0, %v221
    %v223 = vpop.f32.mrf.mxu0
    %v224 = vadd.f32 0.0, %v223
    %225 = vmatmul.bf16.gmra.mxu0 %v131
    %v226 = vpop.f32.mrf.mxu0
    %v227 = vadd.f32 0.0, %v226
    %v228 = vpop.f32.mrf.mxu0
    %v229 = vadd.f32 0.0, %v228
    %230 = vdwg.mxu0
    %231 = vst [vmem:[#allocation2] sm:$0xff] %v143
    %232 = vst [vmem:[#allocation2 + $0x8] sm:$0xff] %v192
    %233 = vst [vmem:[#allocation2 + $0x10] sm:$0xff] %v145
    %234 = vst [vmem:[#allocation2 + $0x18] sm:$0xff] %v194
    %235 = vst [vmem:[#allocation2 + $0x20] sm:$0xff] %v148
    %236 = vst [vmem:[#allocation2 + $0x28] sm:$0xff] %v197
    %237 = vst [vmem:[#allocation2 + $0x30] sm:$0xff] %v150
    %238 = vst [vmem:[#allocation2 + $0x38] sm:$0xff] %v199
    %239 = vst [vmem:[#allocation2 + $0x40] sm:$0xff] %v153
    %240 = vst [vmem:[#allocation2 + $0x48] sm:$0xff] %v202
    %241 = vst [vmem:[#allocation2 + $0x50] sm:$0xff] %v155
    %242 = vst [vmem:[#allocation2 + $0x58] sm:$0xff] %v204
    %243 = vst [vmem:[#allocation2 + $0x60] sm:$0xff] %v158
    %244 = vst [vmem:[#allocation2 + $0x68] sm:$0xff] %v207
    %245 = vst [vmem:[#allocation2 + $0x70] sm:$0xff] %v160
    %246 = vst [vmem:[#allocation2 + $0x78] sm:$0xff] %v209
    %247 = vst [vmem:[#allocation2 + $0x80] sm:$0xff] %v163
    %248 = vst [vmem:[#allocation2 + $0x88] sm:$0xff] %v212
    %249 = vst [vmem:[#allocation2 + $0x90] sm:$0xff] %v165
    %250 = vst [vmem:[#allocation2 + $0x98] sm:$0xff] %v214
    %251 = vst [vmem:[#allocation2 + $0xa0] sm:$0xff] %v168
    %252 = vst [vmem:[#allocation2 + $0xa8] sm:$0xff] %v217
    %253 = vst [vmem:[#allocation2 + $0xb0] sm:$0xff] %v170
    %254 = vst [vmem:[#allocation2 + $0xb8] sm:$0xff] %v219
    %255 = vst [vmem:[#allocation2 + $0xc0] sm:$0xff] %v173
    %256 = vst [vmem:[#allocation2 + $0xc8] sm:$0xff] %v222
    %257 = vst [vmem:[#allocation2 + $0xd0] sm:$0xff] %v175
    %258 = vst [vmem:[#allocation2 + $0xd8] sm:$0xff] %v224
    %259 = vst [vmem:[#allocation2 + $0xe0] sm:$0xff] %v178
    %260 = vst [vmem:[#allocation2 + $0xe8] sm:$0xff] %v227
    %261 = vst [vmem:[#allocation2 + $0xf0] sm:$0xff] %v180
    %262 = vst [vmem:[#allocation2 + $0xf8] sm:$0xff] %v229
    %v263 = vadd.f32 %v143, %v145
    %v264 = vadd.f32 %v263, %v148
    %v265 = vadd.f32 %v264, %v150
    %v266 = vadd.f32 %v265, %v153
    %v267 = vadd.f32 %v266, %v155
    %v268 = vadd.f32 %v267, %v158
    %v269 = vadd.f32 %v268, %v160
    %v270 = vadd.f32 %v269, %v163
    %v271 = vadd.f32 %v270, %v165
    %v272 = vadd.f32 %v271, %v168
    %v273 = vadd.f32 %v272, %v170
    %v274 = vadd.f32 %v273, %v173
    %v275 = vadd.f32 %v274, %v175
    %v276 = vadd.f32 %v275, %v178
    %v277 = vadd.f32 %v276, %v180
    %v278 = vrot.slane %v277, 4
    %v279 = vadd.f32 %v277, %v278
    %v280 = vrot.slane %v279, 2
    %v281 = vadd.f32 %v279, %v280
    %v282 = vrot.slane %v281, 1
    %v283 = vadd.f32 %v281, %v282
    %v284 = vadd.f32 %v192, %v194
    %v285 = vadd.f32 %v284, %v197
    %v286 = vadd.f32 %v285, %v199
    %v287 = vadd.f32 %v286, %v202
    %v288 = vadd.f32 %v287, %v204
    %v289 = vadd.f32 %v288, %v207
    %v290 = vadd.f32 %v289, %v209
    %v291 = vadd.f32 %v290, %v212
    %v292 = vadd.f32 %v291, %v214
    %v293 = vadd.f32 %v292, %v217
    %v294 = vadd.f32 %v293, %v219
    %v295 = vadd.f32 %v294, %v222
    %v296 = vadd.f32 %v295, %v224
    %v297 = vadd.f32 %v296, %v227
    %v298 = vadd.f32 %v297, %v229
    %v299 = vrot.slane %v298, 4
    %v300 = vadd.f32 %v298, %v299
    %v301 = vrot.slane %v300, 2
    %v302 = vadd.f32 %v300, %v301
    %v303 = vrot.slane %v302, 1
    %v304 = vadd.f32 %v302, %v303
    %v305 = vmul.f32 %v143, %v143
    %v306 = vmul.f32 %v192, %v192
    %v307 = vmul.f32 %v145, %v145
    %v308 = vmul.f32 %v194, %v194
    %v309 = vmul.f32 %v148, %v148
    %v310 = vmul.f32 %v197, %v197
    %v311 = vmul.f32 %v150, %v150
    %v312 = vmul.f32 %v199, %v199
    %v313 = vmul.f32 %v153, %v153
    %v314 = vmul.f32 %v202, %v202
    %v315 = vmul.f32 %v155, %v155
    %v316 = vmul.f32 %v204, %v204
    %v317 = vmul.f32 %v158, %v158
    %v318 = vmul.f32 %v207, %v207
    %v319 = vmul.f32 %v160, %v160
    %v320 = vmul.f32 %v209, %v209
    %v321 = vmul.f32 %v163, %v163
    %v322 = vmul.f32 %v212, %v212
    %v323 = vmul.f32 %v165, %v165
    %v324 = vmul.f32 %v214, %v214
    %v325 = vmul.f32 %v168, %v168
    %v326 = vmul.f32 %v217, %v217
    %v327 = vmul.f32 %v170, %v170
    %v328 = vmul.f32 %v219, %v219
    %v329 = vmul.f32 %v173, %v173
    %v330 = vmul.f32 %v222, %v222
    %v331 = vmul.f32 %v175, %v175
    %v332 = vmul.f32 %v224, %v224
    %v333 = vmul.f32 %v178, %v178
    %v334 = vmul.f32 %v227, %v227
    %v335 = vmul.f32 %v180, %v180
    %v336 = vmul.f32 %v229, %v229
    %v337 = vadd.f32 %v305, %v307
    %v338 = vadd.f32 %v337, %v309
    %v339 = vadd.f32 %v338, %v311
    %v340 = vadd.f32 %v339, %v313
    %v341 = vadd.f32 %v340, %v315
    %v342 = vadd.f32 %v341, %v317
    %v343 = vadd.f32 %v342, %v319
    %v344 = vadd.f32 %v343, %v321
    %v345 = vadd.f32 %v344, %v323
    %v346 = vadd.f32 %v345, %v325
    %v347 = vadd.f32 %v346, %v327
    %v348 = vadd.f32 %v347, %v329
    %v349 = vadd.f32 %v348, %v331
    %v350 = vadd.f32 %v349, %v333
    %v351 = vadd.f32 %v350, %v335
    %v352 = vrot.slane %v351, 4
    %v353 = vadd.f32 %v351, %v352
    %v354 = vrot.slane %v353, 2
    %v355 = vadd.f32 %v353, %v354
    %v356 = vrot.slane %v355, 1
    %v357 = vadd.f32 %v355, %v356
    %v358 = vadd.f32 %v306, %v308
    %v359 = vadd.f32 %v358, %v310
    %v360 = vadd.f32 %v359, %v312
    %v361 = vadd.f32 %v360, %v314
    %v362 = vadd.f32 %v361, %v316
    %v363 = vadd.f32 %v362, %v318
    %v364 = vadd.f32 %v363, %v320
    %v365 = vadd.f32 %v364, %v322
    %v366 = vadd.f32 %v365, %v324
    %v367 = vadd.f32 %v366, %v326
    %v368 = vadd.f32 %v367, %v328
    %v369 = vadd.f32 %v368, %v330
    %v370 = vadd.f32 %v369, %v332
    %v371 = vadd.f32 %v370, %v334
    %v372 = vadd.f32 %v371, %v336
    %v373 = vrot.slane %v372, 4
    %v374 = vadd.f32 %v372, %v373
    %v375 = vrot.slane %v374, 2
    %v376 = vadd.f32 %v374, %v375
    %v377 = vrot.slane %v376, 1
    %v378 = vadd.f32 %v376, %v377
    %vm379 = vcmask 1040384
    %v380 = vsel %vm379, %v283, %v357
    %v381 = vsel %vm379, %v304, %v378
    %vm382 = vcmask 1041408
    %v383 = vsel %vm382, %v380, 0.0
    %v384 = vsel %vm382, %v381, 0.0
    %385 = vst [vmem:[#allocation4] sm:$0xff] %v383
    %386 = vst [vmem:[#allocation4 + $0x8] sm:$0xff] %v384
    // Predicated region
    $region10: #{tpu_custom_call.1} parent=1 // pred_check
      _
    $region11: #{tpu_custom_call.1} parent=1 // pred_check_branch
      %388 = sbr.rel (0) target = $region13
    $region12: #{tpu_custom_call.1} parent=1 // pred_region
      %390 = vsyncadd [#allocation3], 0
      %s391 = sshll.u32 [#allocation2], 4
      %s392 = int_to_ptr.vmem [resolvable:$true] %s391
      %s393 = sshll.u32 %s2, 4
      %s394 = int_to_ptr.hbm [resolvable:$true] %s393
      %399 = dma.vmem_to_hbm [thread:$0]  %s392, 4096, %s394, [#allocation3], 256, 256, 16
    $region13: #{tpu_custom_call.1} parent=1 // pred_fallthru
      _
    // Predicated region
    $region14: #{tpu_custom_call.1} parent=1 // pred_check
      _
    $region15: #{tpu_custom_call.1} parent=1 // pred_check_branch
      %401 = sbr.rel (0) target = $region17
    $region16: #{tpu_custom_call.1} parent=1 // pred_region
      %403 = vsyncadd [#allocation5], 0
      %s405 = sshll.u32 [#allocation4], 4
      %s406 = int_to_ptr.vmem [resolvable:$true] %s405
      %s407 = sshll.u32 %s3, 4
      %s408 = int_to_ptr.hbm [resolvable:$true] %s407
      %410 = dma.vmem_to_hbm [thread:$0]  %s406, 256, %s408, [#allocation5]
    $region17: #{tpu_custom_call.1} parent=1 // pred_fallthru
      _
    // Predicated region
    $region18: #{tpu_custom_call.1} parent=1 // pred_check
      _
    $region19: #{tpu_custom_call.1} parent=1 // pred_check_branch
      %412 = sbr.rel (0) target = $region21
    $region20: #{tpu_custom_call.1} parent=1 // pred_region
      %414 = dma.done [#allocation3], 4096
    $region21: #{tpu_custom_call.1} parent=1 // pred_fallthru
      _
    // Predicated region
    $region22: #{tpu_custom_call.1} parent=1 // pred_check
      _
    $region23: #{tpu_custom_call.1} parent=1 // pred_check_branch
      %416 = sbr.rel (0) target = $region25
    $region24: #{tpu_custom_call.1} parent=1 // pred_region
      %418 = dma.done [#allocation5], 256
    $region25: #{tpu_custom_call.1} parent=1 // pred_fallthru
      _
    %419 = vsyncpa [#allocation3], 1
    %420 = vsyncpa [#allocation5], 1

</llo_original>
